<compile_context>
chip_gen: v6e
topology: v6e:2x2x1
jax: 0.10.0
libtpu: 0.0.40
codegen_flags: <defaults>
</compile_context>

<pallas_src>
import jax
import jax.numpy as jnp
from jax.experimental import pallas as pl
from jax.experimental.pallas import tpu as pltpu


# ----------------------------------------------------------------------------
# Pallas kernel: whole-array HBM -> HBM DMA copy (no VMEM round trip).
# ----------------------------------------------------------------------------
def _dma_copy_kernel(x_hbm_ref, o_hbm_ref, sem):
    cp = pltpu.make_async_copy(x_hbm_ref, o_hbm_ref, sem)
    cp.start()
    cp.wait()


def _pallas_identity_copy(x: jax.Array) -> jax.Array:
    """Materializing identity copy of `x` via a single HBM->HBM DMA."""
    if x.size == 0:
        # Nothing to copy; reshape of an empty array is metadata only.
        return x
    return pl.pallas_call(
        _dma_copy_kernel,
        out_shape=jax.ShapeDtypeStruct(x.shape, x.dtype),
        in_specs=[pl.BlockSpec(memory_space=pl.ANY)],
        out_specs=pl.BlockSpec(memory_space=pl.ANY),
        scratch_shapes=[pltpu.SemaphoreType.DMA(())],
    )(x)


# ----------------------------------------------------------------------------
# View "module": mirrors torch.nn.Module View(*args).forward(x) = x.view(args)
# ----------------------------------------------------------------------------
class View:
    def __init__(self, *args, use_copy_kernel: bool = False):
        self.shape = args
        # Default path is metadata-only (matches torch .view: no data movement).
        self.use_copy_kernel = use_copy_kernel

    @staticmethod
    def _resolve_shape(shape, numel):
        # PyTorch .view allows a single -1 dimension to be inferred and raises
        # if the shape does not cover numel exactly.
        shape = list(shape)
        neg = [i for i, s in enumerate(shape) if s == -1]
        if len(neg) > 1:
            raise ValueError("only one dimension can be inferred (-1)")
        if neg:
            idx = neg[0]
            known = 1
            for j, s in enumerate(shape):
                if j != idx:
                    known *= s
            if known == 0 or numel % known != 0:
                # Matches torch: -1 cannot be inferred alongside a 0 dim or a
                # non-dividing product.
                raise ValueError(
                    f"shape {tuple(shape)} is invalid for input of size {numel}"
                )
            shape[idx] = numel // known
        total = 1
        for s in shape:
            total *= s
        if total != numel:
            raise ValueError(
                f"shape {tuple(shape)} is invalid for input of size {numel}"
            )
        return tuple(shape)

    def __call__(self, x: jax.Array) -> jax.Array:
        target = self._resolve_shape(self.shape, x.size)
        if self.use_copy_kernel:
            # Explicit materializing copy (single HBM->HBM DMA), then the
            # metadata-only shape change.
            copied = _pallas_identity_copy(x)
            return jnp.reshape(copied, target)
        # Hot path: a view is metadata-only; reshape of a contiguous array is
        # free in XLA (no HBM traffic, no kernel launch).
        return jnp.reshape(x, target)


if __name__ == "__main__":
    key = jax.random.PRNGKey(0)
    # Small NCHW-like input: batch=2, channels=4, spatial=16x16 -> 2048 elems.
    x = jax.random.normal(key, (2, 4, 16, 16), dtype=jnp.float32)

    # Reference: plain reshape (== torch .view on a contiguous tensor).
    ref = jnp.reshape(x, (2, -1))

    # 1) Default (metadata-only) path.
    view_fast = View(2, -1)
    y_fast = jax.block_until_ready(view_fast(x))
    assert y_fast.shape == (2, 1024), y_fast.shape
    assert y_fast.dtype == x.dtype
    assert bool(jnp.all(y_fast == ref))

    # 2) Pallas HBM->HBM DMA copy path (materializing copy + view).
    view_kernel = View(2, -1, use_copy_kernel=True)
    y_kernel = jax.block_until_ready(view_kernel(x))
    assert y_kernel.shape == (2, 1024), y_kernel.shape
    assert y_kernel.dtype == x.dtype
    assert bool(jnp.all(y_kernel == ref))

    # 3) Copy path on an "awkward" element count (not a multiple of 1024) —
    #    previously skipped the kernel; now copied by the same DMA path.
    x_odd = jax.random.normal(key, (3, 5, 7), dtype=jnp.bfloat16)
    view_odd = View(-1, use_copy_kernel=True)
    y_odd = jax.block_until_ready(view_odd(x_odd))
    assert y_odd.shape == (105,), y_odd.shape
    assert bool(jnp.all(y_odd == jnp.reshape(x_odd, (-1,))))

    print("KERNEL_OK")
</pallas_src>

<mosaic_0001>
module attributes {stable_mosaic.version = 11 : i64} {
  func.func @_dma_copy_kernel(%arg0: memref<2x4x16x16xf32, #tpu.memory_space<any>>, %arg1: memref<2x4x16x16xf32, #tpu.memory_space<any>>, %arg2: memref<!tpu.dma_semaphore, #tpu.memory_space<semaphore_mem>>) attributes {dimension_semantics = [], scalar_prefetch = 0 : i64, scratch_operands = 1 : i64, tpu.core_type = #tpu.core_type<tc>} {
    tpu.enqueue_dma source(%arg0 : memref<2x4x16x16xf32, #tpu.memory_space<any>>) target(%arg1 : memref<2x4x16x16xf32, #tpu.memory_space<any>>) target_semaphore(%arg2 : memref<!tpu.dma_semaphore, #tpu.memory_space<semaphore_mem>>)
    tpu.wait_dma2 semaphore(%arg2 : memref<!tpu.dma_semaphore, #tpu.memory_space<semaphore_mem>>) src(%arg0 : memref<2x4x16x16xf32, #tpu.memory_space<any>>) dst(%arg1 : memref<2x4x16x16xf32, #tpu.memory_space<any>>)
    return
  }
}

</mosaic_0001>

<llo_original>
// kernel: tpu_custom_call.1
$region0: #{tpu_custom_call.1}
  #allocation0 [shape = 'u32[]', space=smem, size = 0x4, offset = 0x4, fixed_abs, tag = 'smem constant byte address 0x4 - core index']
  #allocation1 [shape = 'u32[144,128]{1,0:T(1,128)}', space=vmem, size = 0x12000, scoped, tag = 'internal scratch']
  #allocation2 [shape = 's32[1]{0}', space=sflag, size = 0x4, scoped, tag = 'scratch operand']
  #allocation3 [shape = 's32[]', space=sflag, size = 0x4, offset = 0, fixed_abs, tag = 'sflag constant byte address 0x0 - dummy sync flag']
  #allocation4 [shape = 'u32[0]{0}', space=smem, size = 0, offset = 0, fixed_abs, tag = 'smem constant byte address 0x0 - null']
  %s0 = inlined_call_operand.hbm [shape: f32[2,4,16,16], index: 0, kind: input, shape index: {}]
  %s1 = inlined_call_operand.hbm [shape: f32[2,4,16,16], index: 1, kind: output, shape index: {}]
  %s2 = sld [smem:[#allocation0]]
  $region2: #{tpu_custom_call.1} parent=0
    _
  %s4 = ssub.s32 1, %s2
  %s5 = scalar_select 0, %s4, %s2
  %s7 = sshll.u32 1, 14
  %s8 = sxor.u32 4294967295, %s7
  %12 = dma.general %s0, 2048, %s1, [#allocation2], 131072, [#allocation4], 0, 0
  %s13 = smul.u32 2, 4
  %s14 = smul.u32 %s13, 16
  %s15 = smul.u32 %s14, 1
  %s16 = sshll.u32 %s15, 4
  %17 = dma.done [#allocation2], %s16
  %18 = vsyncmov [#allocation2]
  %s19 = vpop.sfrf %18
  %p20 = scmp.eq.s32.totalorder %s19, 0
  %p21 = pneg %p20
  %23 = shalt.err (%p21)

</llo_original>
